<compile_context>
chip_gen: v7x
topology: tpu7x:2x2x1
jax: 0.10.0
libtpu: 0.0.40
codegen_flags: <defaults>
</compile_context>

<pallas_src>
import functools

import jax
import jax.numpy as jnp
from jax.experimental import pallas as pl
from jax.experimental.pallas import tpu as pltpu


def _round_up(n, m):
    return ((n + m - 1) // m) * m


def _disc_kernel(xT_ref, w1_ref, b1_ref, w2_ref, b2_ref, w3_ref, b3_ref, o_ref):
    """Fused 3-layer MLP on one batch tile; batch lives on the lane dim."""
    cdt = w1_ref.dtype                                    # MXU compute dtype

    # Layer 1: (h1d, in_dim) @ (in_dim, bb) -> (h1d, bb), f32 accumulation.
    h1 = jnp.dot(w1_ref[...], xT_ref[...], preferred_element_type=jnp.float32)
    h1 = jnp.maximum(h1 + b1_ref[...], 0.0)               # bias + ReLU in f32

    # Layer 2: (h2d, h1d) @ (h1d, bb) -> (h2d, bb).
    h2 = jnp.dot(w2_ref[...], h1.astype(cdt), preferred_element_type=jnp.float32)
    h2 = jnp.maximum(h2 + b2_ref[...], 0.0)

    # Layer 3 (out_features == 1): VPU broadcast-multiply + sublane reduction
    # instead of an M=1 MXU matmul (which costs a full MXU pass for 1 row).
    out = jnp.sum(w3_ref[...] * h2, axis=0, keepdims=True)    # (1, bb) f32
    out = out + b3_ref[0]                                      # scalar bias (SMEM)
    o_ref[...] = out.astype(o_ref.dtype)


def _choose_batch_tile(B, in_dim, itemsize):
    """Lane-dim (batch) tile size: adaptive to in_dim, MXU-aligned, VMEM-capped."""
    bytes_per_col = max(in_dim * itemsize, 1)     # bytes of x per batch element
    target_bytes = 4 * 1024 * 1024                # ~4 MiB of x per grid step
    cap_bytes = 6 * 1024 * 1024                   # <= 12 MiB double-buffered (v5e-safe)
    bb_target = max(512, _round_up(target_bytes // bytes_per_col, 256))
    bb_cap = max(256, (cap_bytes // bytes_per_col) // 256 * 256)
    bb_max = min(bb_target, bb_cap)               # cap is exact: both multiples of 256
    if B <= 256:
        return _round_up(B, 128)                  # one lane-aligned tile
    half = (B + 1) // 2                           # >= 2 tiles -> both v7x TCs busy
    return min(_round_up(half, 256), bb_max)


@functools.partial(jax.jit, static_argnames=("compute_dtype",))
def discriminator_forward(x, params, compute_dtype=None):
    """x: (B, input_dim). params in native PyTorch layout: w (out, in), b (out,)."""
    B, in_dim = x.shape
    w1, b1 = params["w1"], params["b1"]           # (128, in_dim), (128,)
    w2, b2 = params["w2"], params["b2"]           # (64, 128),     (64,)
    w3, b3 = params["w3"], params["b3"]           # (1, 64),       (1,)
    h1d, h2d = w1.shape[0], w2.shape[0]

    cdt = jnp.dtype(compute_dtype) if compute_dtype is not None else x.dtype
    w1c, w2c = w1.astype(cdt), w2.astype(cdt)
    b1c = b1.astype(jnp.float32).reshape(h1d, 1)
    b2c = b2.astype(jnp.float32).reshape(h2d, 1)
    w3c = w3.astype(jnp.float32).reshape(h2d, 1)  # column vector for VPU layer
    b3c = b3.astype(jnp.float32).reshape(1)       # scalar, SMEM

    bb = _choose_batch_tile(B, in_dim, jnp.dtype(cdt).itemsize)
    b_pad = _round_up(B, bb)

    # One HBM transpose pass: (B, in_dim) -> lane-dense (in_dim, b_pad).
    xT = x.astype(cdt).T
    if b_pad != B:
        xT = jnp.pad(xT, ((0, 0), (0, b_pad - B)))

    grid = (b_pad // bb,)

    def _resident(shape):
        # Constant index map -> block stays VMEM-resident across all grid steps.
        return pl.BlockSpec(shape, lambda i, _n=len(shape): (0,) * _n)

    out = pl.pallas_call(
        _disc_kernel,
        out_shape=jax.ShapeDtypeStruct((1, b_pad), x.dtype),
        grid_spec=pltpu.PrefetchScalarGridSpec(
            num_scalar_prefetch=0,
            grid=grid,
            in_specs=[
                pl.BlockSpec((in_dim, bb), lambda i: (0, i)),        # x^T tile
                _resident((h1d, in_dim)), _resident((h1d, 1)),       # layer 1
                _resident((h2d, h1d)),    _resident((h2d, 1)),       # layer 2
                _resident((h2d, 1)),                                 # layer 3 weight col
                pl.BlockSpec(memory_space=pltpu.MemorySpace.SMEM),   # b3 scalar
            ],
            out_specs=pl.BlockSpec((1, bb), lambda i: (0, i)),       # lane-dense slab
        ),
        compiler_params=pltpu.CompilerParams(
            dimension_semantics=("parallel",),
            vmem_limit_bytes=32 * 1024 * 1024,
        ),
    )(xT, w1c, b1c, w2c, b2c, w3c, b3c)

    return out[0, :B].reshape(B, 1)


def init_params(key, input_dim, hidden_dims=(128, 64)):
    """nn.Linear-style init, native PyTorch layout: w (out, in), b (out,)."""
    dims = [input_dim] + list(hidden_dims) + [1]
    params = {}
    for idx in range(len(dims) - 1):
        fan_in, fan_out = dims[idx], dims[idx + 1]
        key, kw, kb = jax.random.split(key, 3)
        bound = 1.0 / jnp.sqrt(jnp.float32(fan_in))
        params[f"w{idx + 1}"] = jax.random.uniform(
            kw, (fan_out, fan_in), jnp.float32, -bound, bound)
        params[f"b{idx + 1}"] = jax.random.uniform(
            kb, (fan_out,), jnp.float32, -bound, bound)
    return params


def reference_forward(x, params):
    h = jnp.maximum(x @ params["w1"].T + params["b1"], 0.0)
    h = jnp.maximum(h @ params["w2"].T + params["b2"], 0.0)
    return h @ params["w3"].T + params["b3"]


if __name__ == "__main__":
    key = jax.random.PRNGKey(0)
    input_dim = 32
    params = init_params(key, input_dim, hidden_dims=(128, 64))

    # Case 1: small batch -> single 128-lane tile.
    key, kx = jax.random.split(key)
    x = jax.random.normal(kx, (64, input_dim), jnp.float32)
    out = jax.block_until_ready(discriminator_forward(x, params))
    ref = reference_forward(x, params)
    assert out.shape == (64, 1), out.shape
    assert jnp.allclose(out, ref, atol=1e-4, rtol=1e-4), (
        f"max err {jnp.max(jnp.abs(out - ref))}"
    )

    # Case 2: B=300 -> padded to 2 x 256-lane tiles (multi-tile / v7x dual-TC path).
    key, kx2 = jax.random.split(key)
    x2 = jax.random.normal(kx2, (300, input_dim), jnp.float32)
    out2 = jax.block_until_ready(discriminator_forward(x2, params))
    ref2 = reference_forward(x2, params)
    assert out2.shape == (300, 1), out2.shape
    assert jnp.allclose(out2, ref2, atol=1e-4, rtol=1e-4), (
        f"max err {jnp.max(jnp.abs(out2 - ref2))}"
    )

    # Case 3: optional bf16 MXU path (v6e/v7x throughput lever), relaxed tolerance.
    out3 = jax.block_until_ready(
        discriminator_forward(x2, params, compute_dtype=jnp.bfloat16))
    assert out3.shape == (300, 1), out3.shape
    assert jnp.allclose(out3, ref2, atol=1e-1, rtol=1e-1), (
        f"max err {jnp.max(jnp.abs(out3 - ref2))}"
    )

    print("KERNEL_OK")
</pallas_src>

<mosaic_0001>
module attributes {stable_mosaic.version = 11 : i64} {
  func.func @_disc_kernel(%arg0: i32, %arg1: memref<32x128xf32, #tpu.memory_space<vmem>>, %arg2: memref<128x32xf32, #tpu.memory_space<vmem>>, %arg3: memref<128x1xf32, #tpu.memory_space<vmem>>, %arg4: memref<64x128xf32, #tpu.memory_space<vmem>>, %arg5: memref<64x1xf32, #tpu.memory_space<vmem>>, %arg6: memref<64x1xf32, #tpu.memory_space<vmem>>, %arg7: memref<1xf32, #tpu.memory_space<smem>>, %arg8: memref<1x128xf32, #tpu.memory_space<vmem>>) attributes {dimension_semantics = [#tpu.dimension_semantics<parallel>], iteration_bounds = array<i64: 1>, scalar_prefetch = 0 : i64, scratch_operands = 0 : i64, tpu.core_type = #tpu.core_type<tc>, window_params = [{transform_indices = @transform_0, window_bounds = array<i64: 32, 128>}, {pipeline_mode = #tpu.pipeline_mode<synchronous>, transform_indices = @transform_1, window_bounds = array<i64: 128, 32>}, {pipeline_mode = #tpu.pipeline_mode<synchronous>, transform_indices = @transform_2, window_bounds = array<i64: 128, 1>}, {pipeline_mode = #tpu.pipeline_mode<synchronous>, transform_indices = @transform_3, window_bounds = array<i64: 64, 128>}, {pipeline_mode = #tpu.pipeline_mode<synchronous>, transform_indices = @transform_4, window_bounds = array<i64: 64, 1>}, {pipeline_mode = #tpu.pipeline_mode<synchronous>, transform_indices = @transform_5, window_bounds = array<i64: 64, 1>}, {transform_indices = @transform_6, window_bounds = array<i64: 1>}, {transform_indices = @transform_7, window_bounds = array<i64: 1, 128>}]} {
    %c0 = arith.constant 0 : index
    %c0_0 = arith.constant 0 : index
    %0 = vector.load %arg2[%c0, %c0_0] : memref<128x32xf32, #tpu.memory_space<vmem>>, vector<128x32xf32>
    %c0_1 = arith.constant 0 : index
    %c0_2 = arith.constant 0 : index
    %1 = vector.load %arg1[%c0_1, %c0_2] : memref<32x128xf32, #tpu.memory_space<vmem>>, vector<32x128xf32>
    %cst = arith.constant dense<0.000000e+00> : vector<128x128xf32>
    %2 = tpu.matmul %0, %1, %cst {dimension_numbers = #tpu.dot_dimension_numbers<[1], [0], [0], [1], [0, 0, 1, 1], [], []>} : vector<128x32xf32>, vector<32x128xf32>, vector<128x128xf32> -> vector<128x128xf32>
    %c0_3 = arith.constant 0 : index
    %c0_4 = arith.constant 0 : index
    %3 = vector.load %arg3[%c0_3, %c0_4] : memref<128x1xf32, #tpu.memory_space<vmem>>, vector<128x1xf32>
    %4 = vector.broadcast %3 : vector<128x1xf32> to vector<128x128xf32>
    %5 = arith.addf %2, %4 : vector<128x128xf32>
    %cst_5 = arith.constant 0.000000e+00 : f32
    %6 = vector.broadcast %cst_5 : f32 to vector<128x128xf32>
    %7 = arith.maximumf %5, %6 : vector<128x128xf32>
    %c0_6 = arith.constant 0 : index
    %c0_7 = arith.constant 0 : index
    %8 = vector.load %arg4[%c0_6, %c0_7] : memref<64x128xf32, #tpu.memory_space<vmem>>, vector<64x128xf32>
    %cst_8 = arith.constant dense<0.000000e+00> : vector<64x128xf32>
    %9 = tpu.matmul %8, %7, %cst_8 {dimension_numbers = #tpu.dot_dimension_numbers<[1], [0], [0], [1], [0, 0, 1, 1], [], []>} : vector<64x128xf32>, vector<128x128xf32>, vector<64x128xf32> -> vector<64x128xf32>
    %c0_9 = arith.constant 0 : index
    %c0_10 = arith.constant 0 : index
    %10 = vector.load %arg5[%c0_9, %c0_10] : memref<64x1xf32, #tpu.memory_space<vmem>>, vector<64x1xf32>
    %11 = vector.broadcast %10 : vector<64x1xf32> to vector<64x128xf32>
    %12 = arith.addf %9, %11 : vector<64x128xf32>
    %cst_11 = arith.constant 0.000000e+00 : f32
    %13 = vector.broadcast %cst_11 : f32 to vector<64x128xf32>
    %14 = arith.maximumf %12, %13 : vector<64x128xf32>
    %c0_12 = arith.constant 0 : index
    %c0_13 = arith.constant 0 : index
    %15 = vector.load %arg6[%c0_12, %c0_13] : memref<64x1xf32, #tpu.memory_space<vmem>>, vector<64x1xf32>
    %16 = vector.broadcast %15 : vector<64x1xf32> to vector<64x128xf32>
    %17 = arith.mulf %16, %14 : vector<64x128xf32>
    %cst_14 = arith.constant dense<0.000000e+00> : vector<128xf32>
    %18 = vector.multi_reduction <add>, %17, %cst_14 [0] : vector<64x128xf32> to vector<128xf32>
    %19 = vector.shape_cast %18 : vector<128xf32> to vector<1x128xf32>
    %c0_15 = arith.constant 0 : index
    %20 = memref.load %arg7[%c0_15] : memref<1xf32, #tpu.memory_space<smem>>
    %21 = vector.broadcast %20 : f32 to vector<1x128xf32>
    %22 = arith.addf %19, %21 : vector<1x128xf32>
    %c0_16 = arith.constant 0 : index
    %c0_17 = arith.constant 0 : index
    %23 = vector.load %arg8[%c0_16, %c0_17] : memref<1x128xf32, #tpu.memory_space<vmem>>, vector<1x128xf32>
    tpu.vector_store %arg8[%c0_16, %c0_17], %22 {strides = array<i32>} : memref<1x128xf32, #tpu.memory_space<vmem>>, vector<1x128xf32>,
    return
  }
  func.func @transform_0(%arg0: i32) -> (i32, i32) {
    %c0_i32 = arith.constant 0 : i32
    %c0_i32_0 = arith.constant 0 : i32
    return %c0_i32, %arg0 : i32, i32
  }
  func.func @transform_1(%arg0: i32) -> (i32, i32) {
    %c0_i32 = arith.constant 0 : i32
    %c0_i32_0 = arith.constant 0 : i32
    %c0_i32_1 = arith.constant 0 : i32
    return %c0_i32, %c0_i32_0 : i32, i32
  }
  func.func @transform_2(%arg0: i32) -> (i32, i32) {
    %c0_i32 = arith.constant 0 : i32
    %c0_i32_0 = arith.constant 0 : i32
    %c0_i32_1 = arith.constant 0 : i32
    return %c0_i32, %c0_i32_0 : i32, i32
  }
  func.func @transform_3(%arg0: i32) -> (i32, i32) {
    %c0_i32 = arith.constant 0 : i32
    %c0_i32_0 = arith.constant 0 : i32
    %c0_i32_1 = arith.constant 0 : i32
    return %c0_i32, %c0_i32_0 : i32, i32
  }
  func.func @transform_4(%arg0: i32) -> (i32, i32) {
    %c0_i32 = arith.constant 0 : i32
    %c0_i32_0 = arith.constant 0 : i32
    %c0_i32_1 = arith.constant 0 : i32
    return %c0_i32, %c0_i32_0 : i32, i32
  }
  func.func @transform_5(%arg0: i32) -> (i32, i32) {
    %c0_i32 = arith.constant 0 : i32
    %c0_i32_0 = arith.constant 0 : i32
    %c0_i32_1 = arith.constant 0 : i32
    return %c0_i32, %c0_i32_0 : i32, i32
  }
  func.func @transform_6(%arg0: i32) -> i32 {
    %c0_i32 = arith.constant 0 : i32
    %c0_i32_0 = arith.constant 0 : i32
    return %c0_i32 : i32
  }
  func.func @transform_7(%arg0: i32) -> (i32, i32) {
    %c0_i32 = arith.constant 0 : i32
    %c0_i32_0 = arith.constant 0 : i32
    return %c0_i32, %arg0 : i32, i32
  }
}

</mosaic_0001>

<llo_original>
// kernel: discriminator_forward.1
$region0: #{discriminator_forward.1}
  #allocation0 [shape = 'u32[]', space=smem, size = 0x4, offset = 0x4, fixed_abs, tag = 'smem constant byte address 0x4 - core index']
  #allocation1 [shape = 'u32[144,128]{1,0:T(1,128)}', space=vmem, size = 0x12000, scoped, tag = 'internal scratch']
  #allocation2 [shape = 'f32[1]{0:T(128)S(6)}', space=smem, size = 0x200, scoped, tag = 'scoped memory for discriminator_forward.1']
  %s0 = inlined_call_operand.vmem [shape: f32[32,128], index: 0, kind: input, shape index: {}]
  %s1 = inlined_call_operand.vmem [shape: f32[128,32], index: 1, kind: input, shape index: {}]
  %s2 = inlined_call_operand.vmem [shape: f32[128,1], index: 2, kind: input, shape index: {}]
  %s3 = inlined_call_operand.vmem [shape: f32[64,128], index: 3, kind: input, shape index: {}]
  %s4 = inlined_call_operand.vmem [shape: f32[64,1], index: 4, kind: input, shape index: {}]
  %s5 = inlined_call_operand.vmem [shape: f32[64,1], index: 5, kind: input, shape index: {}]
  %s6 = inlined_call_operand.<no memory space> [shape: f32[1], index: 6, kind: input, shape index: {}]
  %s7 = inlined_call_operand.vmem [shape: f32[1,128], index: 7, kind: output, shape index: {}]
  %s8 = sld [smem:[#allocation0]]
  $region38: #{discriminator_forward.1} parent=0
    _
  %s10 = ssub.s32 1, %s8
  %s11 = scalar_select 0, %s10, %s8
  %12 = sst [smem:[#allocation2]] %s6
  // Predicated region
  $region2: #{discriminator_forward.1} parent=0 // pred_check
    _
  $region3: #{discriminator_forward.1} parent=0 // pred_check_branch
    %14 = sbr.rel (0) target = $region5
  $region4: #{discriminator_forward.1} parent=0 // pred_region
    _
  $region5: #{discriminator_forward.1} parent=0 // pred_fallthru
    _
  // Predicated region
  $region6: #{discriminator_forward.1} parent=0 // pred_check
    _
  $region7: #{discriminator_forward.1} parent=0 // pred_check_branch
    %16 = sbr.rel (0) target = $region9
  $region8: #{discriminator_forward.1} parent=0 // pred_region
    _
  $region9: #{discriminator_forward.1} parent=0 // pred_fallthru
    _
  // Predicated region
  $region10: #{discriminator_forward.1} parent=0 // pred_check
    _
  $region11: #{discriminator_forward.1} parent=0 // pred_check_branch
    %18 = sbr.rel (0) target = $region13
  $region12: #{discriminator_forward.1} parent=0 // pred_region
    _
  $region13: #{discriminator_forward.1} parent=0 // pred_fallthru
    _
  // Predicated region
  $region14: #{discriminator_forward.1} parent=0 // pred_check
    _
  $region15: #{discriminator_forward.1} parent=0 // pred_check_branch
    %20 = sbr.rel (0) target = $region17
  $region16: #{discriminator_forward.1} parent=0 // pred_region
    _
  $region17: #{discriminator_forward.1} parent=0 // pred_fallthru
    _
  // Predicated region
  $region18: #{discriminator_forward.1} parent=0 // pred_check
    _
  $region19: #{discriminator_forward.1} parent=0 // pred_check_branch
    %22 = sbr.rel (0) target = $region21
  $region20: #{discriminator_forward.1} parent=0 // pred_region
    _
  $region21: #{discriminator_forward.1} parent=0 // pred_fallthru
    _
  // Predicated region
  $region22: #{discriminator_forward.1} parent=0 // pred_check
    _
  $region23: #{discriminator_forward.1} parent=0 // pred_check_branch
    %24 = sbr.rel (0) target = $region25
  $region24: #{discriminator_forward.1} parent=0 // pred_region
    _
  $region25: #{discriminator_forward.1} parent=0 // pred_fallthru
    _
  // Predicated region
  $region26: #{discriminator_forward.1} parent=0 // pred_check
    _
  $region27: #{discriminator_forward.1} parent=0 // pred_check_branch
    %26 = sbr.rel (0) target = $region29
  $region28: #{discriminator_forward.1} parent=0 // pred_region
    _
  $region29: #{discriminator_forward.1} parent=0 // pred_fallthru
    _
  %v27 = vld [vmem:[%s1] sm:$0xff]
  %v28 = vld [vmem:[%s1 + $0x8] sm:$0xff]
  %v29 = vld [vmem:[%s1 + $0x10] sm:$0xff]
  %v30 = vld [vmem:[%s1 + $0x18] sm:$0xff]
  %v31 = vld [vmem:[%s1 + $0x20] sm:$0xff]
  %v32 = vld [vmem:[%s1 + $0x28] sm:$0xff]
  %v33 = vld [vmem:[%s1 + $0x30] sm:$0xff]
  %v34 = vld [vmem:[%s1 + $0x38] sm:$0xff]
  %v35 = vld [vmem:[%s1 + $0x40] sm:$0xff]
  %v36 = vld [vmem:[%s1 + $0x48] sm:$0xff]
  %v37 = vld [vmem:[%s1 + $0x50] sm:$0xff]
  %v38 = vld [vmem:[%s1 + $0x58] sm:$0xff]
  %v39 = vld [vmem:[%s1 + $0x60] sm:$0xff]
  %v40 = vld [vmem:[%s1 + $0x68] sm:$0xff]
  %v41 = vld [vmem:[%s1 + $0x70] sm:$0xff]
  %v42 = vld [vmem:[%s1 + $0x78] sm:$0xff]
  %v43 = vld [vmem:[%s0] sm:$0xff]
  %v44 = vld [vmem:[%s0 + $0x8] sm:$0xff]
  %v45 = vld [vmem:[%s0 + $0x10] sm:$0xff]
  %v46 = vld [vmem:[%s0 + $0x18] sm:$0xff]
  %v47 = vld [vmem:[%s2] sm:$0xff]
  %v48 = vld [vmem:[%s2 + $0x8] sm:$0xff]
  %v49 = vld [vmem:[%s2 + $0x10] sm:$0xff]
  %v50 = vld [vmem:[%s2 + $0x18] sm:$0xff]
  %v51 = vld [vmem:[%s2 + $0x20] sm:$0xff]
  %v52 = vld [vmem:[%s2 + $0x28] sm:$0xff]
  %v53 = vld [vmem:[%s2 + $0x30] sm:$0xff]
  %v54 = vld [vmem:[%s2 + $0x38] sm:$0xff]
  %v55 = vld [vmem:[%s2 + $0x40] sm:$0xff]
  %v56 = vld [vmem:[%s2 + $0x48] sm:$0xff]
  %v57 = vld [vmem:[%s2 + $0x50] sm:$0xff]
  %v58 = vld [vmem:[%s2 + $0x58] sm:$0xff]
  %v59 = vld [vmem:[%s2 + $0x60] sm:$0xff]
  %v60 = vld [vmem:[%s2 + $0x68] sm:$0xff]
  %v61 = vld [vmem:[%s2 + $0x70] sm:$0xff]
  %v62 = vld [vmem:[%s2 + $0x78] sm:$0xff]
  %64 = vset.pattern.permute.xlu0 0
  %65 = vperm.xlu0 %64, %v47
  %v66 = vpop.permute.xlu0 %65
  %69 = vset.pattern.permute.xlu0 0
  %70 = vperm.xlu0 %69, %v48
  %v71 = vpop.permute.xlu0 %70
  %74 = vset.pattern.permute.xlu0 0
  %75 = vperm.xlu0 %74, %v49
  %v76 = vpop.permute.xlu0 %75
  %79 = vset.pattern.permute.xlu0 0
  %80 = vperm.xlu0 %79, %v50
  %v81 = vpop.permute.xlu0 %80
  %84 = vset.pattern.permute.xlu0 0
  %85 = vperm.xlu0 %84, %v51
  %v86 = vpop.permute.xlu0 %85
  %89 = vset.pattern.permute.xlu0 0
  %90 = vperm.xlu0 %89, %v52
  %v91 = vpop.permute.xlu0 %90
  %94 = vset.pattern.permute.xlu0 0
  %95 = vperm.xlu0 %94, %v53
  %v96 = vpop.permute.xlu0 %95
  %99 = vset.pattern.permute.xlu0 0
  %100 = vperm.xlu0 %99, %v54
  %v101 = vpop.permute.xlu0 %100
  %104 = vset.pattern.permute.xlu0 0
  %105 = vperm.xlu0 %104, %v55
  %v106 = vpop.permute.xlu0 %105
  %109 = vset.pattern.permute.xlu0 0
  %110 = vperm.xlu0 %109, %v56
  %v111 = vpop.permute.xlu0 %110
  %114 = vset.pattern.permute.xlu0 0
  %115 = vperm.xlu0 %114, %v57
  %v116 = vpop.permute.xlu0 %115
  %119 = vset.pattern.permute.xlu0 0
  %120 = vperm.xlu0 %119, %v58
  %v121 = vpop.permute.xlu0 %120
  %124 = vset.pattern.permute.xlu0 0
  %125 = vperm.xlu0 %124, %v59
  %v126 = vpop.permute.xlu0 %125
  %129 = vset.pattern.permute.xlu0 0
  %130 = vperm.xlu0 %129, %v60
  %v131 = vpop.permute.xlu0 %130
  %134 = vset.pattern.permute.xlu0 0
  %135 = vperm.xlu0 %134, %v61
  %v136 = vpop.permute.xlu0 %135
  %139 = vset.pattern.permute.xlu0 0
  %140 = vperm.xlu0 %139, %v62
  %v141 = vpop.permute.xlu0 %140
  %vm143 = vcmask 261120
  %v145 = vsel %vm143, %v27, 0
  %v148 = vsel %vm143, %v28, 0
  %v151 = vsel %vm143, %v29, 0
  %v154 = vsel %vm143, %v30, 0
  %v157 = vsel %vm143, %v31, 0
  %v160 = vsel %vm143, %v32, 0
  %v163 = vsel %vm143, %v33, 0
  %v166 = vsel %vm143, %v34, 0
  %v169 = vsel %vm143, %v35, 0
  %v172 = vsel %vm143, %v36, 0
  %v175 = vsel %vm143, %v37, 0
  %v178 = vsel %vm143, %v38, 0
  %v181 = vsel %vm143, %v39, 0
  %v184 = vsel %vm143, %v40, 0
  %v187 = vsel %vm143, %v41, 0
  %v190 = vsel %vm143, %v42, 0
  %192 = vmatprep.subr.mxu0 0.0
  %193 = vmatpush1.msra.mxu0 %v43
  %194 = vmatprep.subr.mxu0 0.0
  %195 = vmatpush1.msra.mxu0 %v44
  %196 = vmatprep.subr.mxu0 0.0
  %197 = vmatpush1.msra.mxu0 %v45
  %198 = vmatprep.subr.mxu0 0.0
  %199 = vmatpush1.msra.mxu0 %v46
  %200 = vmatprep.subr.mxu0 0.0
  %201 = vmatpush1.msra.mxu0 0.0
  %202 = vmatprep.subr.mxu0 0.0
  %203 = vmatpush1.msra.mxu0 0.0
  %204 = vmatprep.subr.mxu0 0.0
  %205 = vmatpush1.msra.mxu0 0.0
  %206 = vmatprep.subr.mxu0 0.0
  %207 = vmatpush1.msra.mxu0 0.0
  %208 = vmatprep.subr.mxu0 0.0
  %209 = vmatpush1.msra.mxu0 0.0
  %210 = vmatprep.subr.mxu0 0.0
  %211 = vmatpush1.msra.mxu0 0.0
  %212 = vmatprep.subr.mxu0 0.0
  %213 = vmatpush1.msra.mxu0 0.0
  %214 = vmatprep.subr.mxu0 0.0
  %215 = vmatpush1.msra.mxu0 0.0
  %216 = vmatprep.subr.mxu0 0.0
  %217 = vmatpush1.msra.mxu0 0.0
  %218 = vmatprep.subr.mxu0 0.0
  %219 = vmatpush1.msra.mxu0 0.0
  %220 = vmatprep.subr.mxu0 0.0
  %221 = vmatpush1.msra.mxu0 0.0
  %222 = vmatprep.subr.mxu0 0.0
  %223 = vmatpush1.msra.mxu0 0.0
  %224 = vmatprep.subr.mxu0 0.0
  %225 = vmatpush1.msra.mxu0 0.0
  %226 = vmatprep.subr.mxu0 0.0
  %227 = vmatpush1.msra.mxu0 0.0
  %228 = vmatprep.subr.mxu0 0.0
  %229 = vmatpush1.msra.mxu0 0.0
  %230 = vmatprep.subr.mxu0 0.0
  %231 = vmatpush1.msra.mxu0 0.0
  %232 = vmatprep.subr.mxu0 0.0
  %233 = vmatpush1.msra.mxu0 0.0
  %234 = vmatprep.subr.mxu0 0.0
  %235 = vmatpush1.msra.mxu0 0.0
  %236 = vmatprep.subr.mxu0 0.0
  %237 = vmatpush1.msra.mxu0 0.0
  %238 = vmatprep.subr.mxu0 0.0
  %239 = vmatpush1.msra.mxu0 0.0
  %240 = vmatprep.subr.mxu0 0.0
  %241 = vmatpush1.msra.mxu0 0.0
  %242 = vmatprep.subr.mxu0 0.0
  %243 = vmatpush1.msra.mxu0 0.0
  %244 = vmatprep.subr.mxu0 0.0
  %245 = vmatpush1.msra.mxu0 0.0
  %246 = vmatprep.subr.mxu0 0.0
  %247 = vmatpush1.msra.mxu0 0.0
  %248 = vmatprep.subr.mxu0 0.0
  %249 = vmatpush1.msra.mxu0 0.0
  %250 = vmatprep.subr.mxu0 0.0
  %251 = vmatpush1.msra.mxu0 0.0
  %252 = vmatprep.subr.mxu0 0.0
  %253 = vmatpush1.msra.mxu0 0.0
  %254 = vmatprep.subr.mxu0 0.0
  %255 = vmatpush1.msra.mxu0 0.0
  %256 = vmatprep.mubr.f32.mxu0 0.0
  %257 = vmatmul.mubr.f32.gmra.mrb[0].mxu0 %v145
  %v258 = vpop.f32.mrb[0].mxu0
  %v259 = vadd.f32 %v66, %v258
  %v260 = vpop.f32.mrb[0].mxu0
  %261 = vmatprep.mubr.f32.mxu0 0.0
  %262 = vmatmul.mubr.f32.gmra.mrb[0].mxu0 %v148
  %v263 = vpop.f32.mrb[0].mxu0
  %v264 = vadd.f32 %v71, %v263
  %v265 = vpop.f32.mrb[0].mxu0
  %266 = vmatprep.mubr.f32.mxu0 0.0
  %267 = vmatmul.mubr.f32.gmra.mrb[0].mxu0 %v151
  %v268 = vpop.f32.mrb[0].mxu0
  %v269 = vadd.f32 %v76, %v268
  %v270 = vpop.f32.mrb[0].mxu0
  %271 = vmatprep.mubr.f32.mxu0 0.0
  %272 = vmatmul.mubr.f32.gmra.mrb[0].mxu0 %v154
  %v273 = vpop.f32.mrb[0].mxu0
  %v274 = vadd.f32 %v81, %v273
  %v275 = vpop.f32.mrb[0].mxu0
  %276 = vmatprep.mubr.f32.mxu0 0.0
  %277 = vmatmul.mubr.f32.gmra.mrb[0].mxu0 %v157
  %v278 = vpop.f32.mrb[0].mxu0
  %v279 = vadd.f32 %v86, %v278
  %v280 = vpop.f32.mrb[0].mxu0
  %281 = vmatprep.mubr.f32.mxu0 0.0
  %282 = vmatmul.mubr.f32.gmra.mrb[0].mxu0 %v160
  %v283 = vpop.f32.mrb[0].mxu0
  %v284 = vadd.f32 %v91, %v283
  %v285 = vpop.f32.mrb[0].mxu0
  %286 = vmatprep.mubr.f32.mxu0 0.0
  %287 = vmatmul.mubr.f32.gmra.mrb[0].mxu0 %v163
  %v288 = vpop.f32.mrb[0].mxu0
  %v289 = vadd.f32 %v96, %v288
  %v290 = vpop.f32.mrb[0].mxu0
  %291 = vmatprep.mubr.f32.mxu0 0.0
  %292 = vmatmul.mubr.f32.gmra.mrb[0].mxu0 %v166
  %v293 = vpop.f32.mrb[0].mxu0
  %v294 = vadd.f32 %v101, %v293
  %v295 = vpop.f32.mrb[0].mxu0
  %296 = vmatprep.mubr.f32.mxu0 0.0
  %297 = vmatmul.mubr.f32.gmra.mrb[0].mxu0 %v169
  %v298 = vpop.f32.mrb[0].mxu0
  %v299 = vadd.f32 %v106, %v298
  %v300 = vpop.f32.mrb[0].mxu0
  %301 = vmatprep.mubr.f32.mxu0 0.0
  %302 = vmatmul.mubr.f32.gmra.mrb[0].mxu0 %v172
  %v303 = vpop.f32.mrb[0].mxu0
  %v304 = vadd.f32 %v111, %v303
  %v305 = vpop.f32.mrb[0].mxu0
  %306 = vmatprep.mubr.f32.mxu0 0.0
  %307 = vmatmul.mubr.f32.gmra.mrb[0].mxu0 %v175
  %v308 = vpop.f32.mrb[0].mxu0
  %v309 = vadd.f32 %v116, %v308
  %v310 = vpop.f32.mrb[0].mxu0
  %311 = vmatprep.mubr.f32.mxu0 0.0
  %312 = vmatmul.mubr.f32.gmra.mrb[0].mxu0 %v178
  %v313 = vpop.f32.mrb[0].mxu0
  %v314 = vadd.f32 %v121, %v313
  %v315 = vpop.f32.mrb[0].mxu0
  %316 = vmatprep.mubr.f32.mxu0 0.0
  %317 = vmatmul.mubr.f32.gmra.mrb[0].mxu0 %v181
  %v318 = vpop.f32.mrb[0].mxu0
  %v319 = vadd.f32 %v126, %v318
  %v320 = vpop.f32.mrb[0].mxu0
  %321 = vmatprep.mubr.f32.mxu0 0.0
  %322 = vmatmul.mubr.f32.gmra.mrb[0].mxu0 %v184
  %v323 = vpop.f32.mrb[0].mxu0
  %v324 = vadd.f32 %v131, %v323
  %v325 = vpop.f32.mrb[0].mxu0
  %326 = vmatprep.mubr.f32.mxu0 0.0
  %327 = vmatmul.mubr.f32.gmra.mrb[0].mxu0 %v187
  %v328 = vpop.f32.mrb[0].mxu0
  %v329 = vadd.f32 %v136, %v328
  %v330 = vpop.f32.mrb[0].mxu0
  %331 = vmatprep.mubr.f32.mxu0 0.0
  %332 = vmatmul.mubr.f32.gmra.mrb[0].mxu0 %v190
  %v333 = vpop.f32.mrb[0].mxu0
  %v334 = vadd.f32 %v141, %v333
  %v335 = vpop.f32.mrb[0].mxu0
  %336 = vdwg.mxu0
  %v337 = vmax.f32 %v259, 0.0
  %v338 = vmax.f32 %v264, 0.0
  %v339 = vmax.f32 %v269, 0.0
  %v340 = vmax.f32 %v274, 0.0
  %v341 = vmax.f32 %v279, 0.0
  %v342 = vmax.f32 %v284, 0.0
  %v343 = vmax.f32 %v289, 0.0
  %v344 = vmax.f32 %v294, 0.0
  %v345 = vmax.f32 %v299, 0.0
  %v346 = vmax.f32 %v304, 0.0
  %v347 = vmax.f32 %v309, 0.0
  %v348 = vmax.f32 %v314, 0.0
  %v349 = vmax.f32 %v319, 0.0
  %v350 = vmax.f32 %v324, 0.0
  %v351 = vmax.f32 %v329, 0.0
  %v352 = vmax.f32 %v334, 0.0
  %v353 = vld [vmem:[%s3] sm:$0xff]
  %v354 = vld [vmem:[%s3 + $0x8] sm:$0xff]
  %v355 = vld [vmem:[%s3 + $0x10] sm:$0xff]
  %v356 = vld [vmem:[%s3 + $0x18] sm:$0xff]
  %v357 = vld [vmem:[%s3 + $0x20] sm:$0xff]
  %v358 = vld [vmem:[%s3 + $0x28] sm:$0xff]
  %v359 = vld [vmem:[%s3 + $0x30] sm:$0xff]
  %v360 = vld [vmem:[%s3 + $0x38] sm:$0xff]
  %v361 = vld [vmem:[%s4] sm:$0xff]
  %v362 = vld [vmem:[%s4 + $0x8] sm:$0xff]
  %v363 = vld [vmem:[%s4 + $0x10] sm:$0xff]
  %v364 = vld [vmem:[%s4 + $0x18] sm:$0xff]
  %v365 = vld [vmem:[%s4 + $0x20] sm:$0xff]
  %v366 = vld [vmem:[%s4 + $0x28] sm:$0xff]
  %v367 = vld [vmem:[%s4 + $0x30] sm:$0xff]
  %v368 = vld [vmem:[%s4 + $0x38] sm:$0xff]
  %370 = vset.pattern.permute.xlu0 0
  %371 = vperm.xlu0 %370, %v361
  %v372 = vpop.permute.xlu0 %371
  %375 = vset.pattern.permute.xlu0 0
  %376 = vperm.xlu0 %375, %v362
  %v377 = vpop.permute.xlu0 %376
  %380 = vset.pattern.permute.xlu0 0
  %381 = vperm.xlu0 %380, %v363
  %v382 = vpop.permute.xlu0 %381
  %385 = vset.pattern.permute.xlu0 0
  %386 = vperm.xlu0 %385, %v364
  %v387 = vpop.permute.xlu0 %386
  %390 = vset.pattern.permute.xlu0 0
  %391 = vperm.xlu0 %390, %v365
  %v392 = vpop.permute.xlu0 %391
  %395 = vset.pattern.permute.xlu0 0
  %396 = vperm.xlu0 %395, %v366
  %v397 = vpop.permute.xlu0 %396
  %400 = vset.pattern.permute.xlu0 0
  %401 = vperm.xlu0 %400, %v367
  %v402 = vpop.permute.xlu0 %401
  %405 = vset.pattern.permute.xlu0 0
  %406 = vperm.xlu0 %405, %v368
  %v407 = vpop.permute.xlu0 %406
  %409 = vmatprep.subr.mxu0 0.0
  %410 = vmatpush1.msra.mxu0 %v337
  %411 = vmatprep.subr.mxu0 0.0
  %412 = vmatpush1.msra.mxu0 %v338
  %413 = vmatprep.subr.mxu0 0.0
  %414 = vmatpush1.msra.mxu0 %v339
  %415 = vmatprep.subr.mxu0 0.0
  %416 = vmatpush1.msra.mxu0 %v340
  %417 = vmatprep.subr.mxu0 0.0
  %418 = vmatpush1.msra.mxu0 %v341
  %419 = vmatprep.subr.mxu0 0.0
  %420 = vmatpush1.msra.mxu0 %v342
  %421 = vmatprep.subr.mxu0 0.0
  %422 = vmatpush1.msra.mxu0 %v343
  %423 = vmatprep.subr.mxu0 0.0
  %424 = vmatpush1.msra.mxu0 %v344
  %425 = vmatprep.subr.mxu0 0.0
  %426 = vmatpush1.msra.mxu0 %v345
  %427 = vmatprep.subr.mxu0 0.0
  %428 = vmatpush1.msra.mxu0 %v346
  %429 = vmatprep.subr.mxu0 0.0
  %430 = vmatpush1.msra.mxu0 %v347
  %431 = vmatprep.subr.mxu0 0.0
  %432 = vmatpush1.msra.mxu0 %v348
  %433 = vmatprep.subr.mxu0 0.0
  %434 = vmatpush1.msra.mxu0 %v349
  %435 = vmatprep.subr.mxu0 0.0
  %436 = vmatpush1.msra.mxu0 %v350
  %437 = vmatprep.subr.mxu0 0.0
  %438 = vmatpush1.msra.mxu0 %v351
  %439 = vmatprep.subr.mxu0 0.0
  %440 = vmatpush1.msra.mxu0 %v352
  %441 = vmatprep.subr.mxu0 0.0
  %442 = vmatpush1.msra.mxu0 0.0
  %443 = vmatprep.subr.mxu0 0.0
  %444 = vmatpush1.msra.mxu0 0.0
  %445 = vmatprep.subr.mxu0 0.0
  %446 = vmatpush1.msra.mxu0 0.0
  %447 = vmatprep.subr.mxu0 0.0
  %448 = vmatpush1.msra.mxu0 0.0
  %449 = vmatprep.subr.mxu0 0.0
  %450 = vmatpush1.msra.mxu0 0.0
  %451 = vmatprep.subr.mxu0 0.0
  %452 = vmatpush1.msra.mxu0 0.0
  %453 = vmatprep.subr.mxu0 0.0
  %454 = vmatpush1.msra.mxu0 0.0
  %455 = vmatprep.subr.mxu0 0.0
  %456 = vmatpush1.msra.mxu0 0.0
  %457 = vmatprep.subr.mxu0 0.0
  %458 = vmatpush1.msra.mxu0 0.0
  %459 = vmatprep.subr.mxu0 0.0
  %460 = vmatpush1.msra.mxu0 0.0
  %461 = vmatprep.subr.mxu0 0.0
  %462 = vmatpush1.msra.mxu0 0.0
  %463 = vmatprep.subr.mxu0 0.0
  %464 = vmatpush1.msra.mxu0 0.0
  %465 = vmatprep.subr.mxu0 0.0
  %466 = vmatpush1.msra.mxu0 0.0
  %467 = vmatprep.subr.mxu0 0.0
  %468 = vmatpush1.msra.mxu0 0.0
  %469 = vmatprep.subr.mxu0 0.0
  %470 = vmatpush1.msra.mxu0 0.0
  %471 = vmatprep.subr.mxu0 0.0
  %472 = vmatpush1.msra.mxu0 0.0
  %473 = vmatprep.mubr.f32.mxu0 0.0
  %474 = vmatmul.mubr.f32.gmra.mrb[0].mxu0 %v353
  %v475 = vpop.f32.mrb[0].mxu0
  %v476 = vadd.f32 %v372, %v475
  %v477 = vpop.f32.mrb[0].mxu0
  %478 = vmatprep.mubr.f32.mxu0 0.0
  %479 = vmatmul.mubr.f32.gmra.mrb[0].mxu0 %v354
  %v480 = vpop.f32.mrb[0].mxu0
  %v481 = vadd.f32 %v377, %v480
  %v482 = vpop.f32.mrb[0].mxu0
  %483 = vmatprep.mubr.f32.mxu0 0.0
  %484 = vmatmul.mubr.f32.gmra.mrb[0].mxu0 %v355
  %v485 = vpop.f32.mrb[0].mxu0
  %v486 = vadd.f32 %v382, %v485
  %v487 = vpop.f32.mrb[0].mxu0
  %488 = vmatprep.mubr.f32.mxu0 0.0
  %489 = vmatmul.mubr.f32.gmra.mrb[0].mxu0 %v356
  %v490 = vpop.f32.mrb[0].mxu0
  %v491 = vadd.f32 %v387, %v490
  %v492 = vpop.f32.mrb[0].mxu0
  %493 = vmatprep.mubr.f32.mxu0 0.0
  %494 = vmatmul.mubr.f32.gmra.mrb[0].mxu0 %v357
  %v495 = vpop.f32.mrb[0].mxu0
  %v496 = vadd.f32 %v392, %v495
  %v497 = vpop.f32.mrb[0].mxu0
  %498 = vmatprep.mubr.f32.mxu0 0.0
  %499 = vmatmul.mubr.f32.gmra.mrb[0].mxu0 %v358
  %v500 = vpop.f32.mrb[0].mxu0
  %v501 = vadd.f32 %v397, %v500
  %v502 = vpop.f32.mrb[0].mxu0
  %503 = vmatprep.mubr.f32.mxu0 0.0
  %504 = vmatmul.mubr.f32.gmra.mrb[0].mxu0 %v359
  %v505 = vpop.f32.mrb[0].mxu0
  %v506 = vadd.f32 %v402, %v505
  %v507 = vpop.f32.mrb[0].mxu0
  %508 = vmatprep.mubr.f32.mxu0 0.0
  %509 = vmatmul.mubr.f32.gmra.mrb[0].mxu0 %v360
  %v510 = vpop.f32.mrb[0].mxu0
  %v511 = vadd.f32 %v407, %v510
  %v512 = vpop.f32.mrb[0].mxu0
  %513 = vdwg.mxu0
  %v514 = vmax.f32 %v476, 0.0
  %v515 = vmax.f32 %v481, 0.0
  %v516 = vmax.f32 %v486, 0.0
  %v517 = vmax.f32 %v491, 0.0
  %v518 = vmax.f32 %v496, 0.0
  %v519 = vmax.f32 %v501, 0.0
  %v520 = vmax.f32 %v506, 0.0
  %v521 = vmax.f32 %v511, 0.0
  %v522 = vld [vmem:[%s5] sm:$0xff]
  %v523 = vld [vmem:[%s5 + $0x8] sm:$0xff]
  %v524 = vld [vmem:[%s5 + $0x10] sm:$0xff]
  %v525 = vld [vmem:[%s5 + $0x18] sm:$0xff]
  %v526 = vld [vmem:[%s5 + $0x20] sm:$0xff]
  %v527 = vld [vmem:[%s5 + $0x28] sm:$0xff]
  %v528 = vld [vmem:[%s5 + $0x30] sm:$0xff]
  %v529 = vld [vmem:[%s5 + $0x38] sm:$0xff]
  %531 = vset.pattern.permute.xlu0 0
  %532 = vperm.xlu0 %531, %v522
  %v533 = vpop.permute.xlu0 %532
  %536 = vset.pattern.permute.xlu0 0
  %537 = vperm.xlu0 %536, %v523
  %v538 = vpop.permute.xlu0 %537
  %541 = vset.pattern.permute.xlu0 0
  %542 = vperm.xlu0 %541, %v524
  %v543 = vpop.permute.xlu0 %542
  %546 = vset.pattern.permute.xlu0 0
  %547 = vperm.xlu0 %546, %v525
  %v548 = vpop.permute.xlu0 %547
  %551 = vset.pattern.permute.xlu0 0
  %552 = vperm.xlu0 %551, %v526
  %v553 = vpop.permute.xlu0 %552
  %556 = vset.pattern.permute.xlu0 0
  %557 = vperm.xlu0 %556, %v527
  %v558 = vpop.permute.xlu0 %557
  %561 = vset.pattern.permute.xlu0 0
  %562 = vperm.xlu0 %561, %v528
  %v563 = vpop.permute.xlu0 %562
  %566 = vset.pattern.permute.xlu0 0
  %567 = vperm.xlu0 %566, %v529
  %v568 = vpop.permute.xlu0 %567
  %v570 = vmul.f32 %v533, %v514
  %v571 = vmul.f32 %v538, %v515
  %v572 = vmul.f32 %v543, %v516
  %v573 = vmul.f32 %v548, %v517
  %v574 = vmul.f32 %v553, %v518
  %v575 = vmul.f32 %v558, %v519
  %v576 = vmul.f32 %v563, %v520
  %v577 = vmul.f32 %v568, %v521
  %v578 = vadd.f32 %v570, %v571
  %v579 = vadd.f32 %v578, %v572
  %v580 = vadd.f32 %v579, %v573
  %v581 = vadd.f32 %v580, %v574
  %v582 = vadd.f32 %v581, %v575
  %v583 = vadd.f32 %v582, %v576
  %v584 = vadd.f32 %v583, %v577
  %v585 = vrot.slane %v584, 4
  %v586 = vadd.f32 %v584, %v585
  %v587 = vrot.slane %v586, 2
  %v588 = vadd.f32 %v586, %v587
  %v589 = vrot.slane %v588, 1
  %v590 = vadd.f32 %v588, %v589
  %s591 = sld [smem:[#allocation2]]
  %v592 = vstv %s591
  %v593 = vadd.f32 %v590, %v592
  %594 = vst [vmem:[%s7] sm:$0x1] %v593
  // Predicated region
  $region30: #{discriminator_forward.1} parent=0 // pred_check
    _
  $region31: #{discriminator_forward.1} parent=0 // pred_check_branch
    %596 = sbr.rel (0) target = $region33
  $region32: #{discriminator_forward.1} parent=0 // pred_region
    _
  $region33: #{discriminator_forward.1} parent=0 // pred_fallthru
    _
  // Predicated region
  $region34: #{discriminator_forward.1} parent=0 // pred_check
    _
  $region35: #{discriminator_forward.1} parent=0 // pred_check_branch
    %598 = sbr.rel (0) target = $region37
  $region36: #{discriminator_forward.1} parent=0 // pred_region
    _
  $region37: #{discriminator_forward.1} parent=0 // pred_fallthru
    _

</llo_original>
